<compile_context>
chip_gen: v6e
topology: v6e:2x2x1
jax: 0.10.0
libtpu: 0.0.40
codegen_flags: <defaults>
</compile_context>

<pallas_src>
import functools
import math

import jax
import jax.numpy as jnp
from jax.experimental import pallas as pl
from jax.experimental.pallas import tpu as pltpu

d_k = d_v = 128  # module-level constants from DT_Former.py (scale = 1/sqrt(d_k))


# ----------------------------------------------------------------------------
# Fused kernel: per (batch, query-tile), all heads at once.
# ----------------------------------------------------------------------------
def _sdpa_kernel(q_ref, k_ref, v_ref, ctx_ref, attn_ref, *, scale, compute_dtype):
    q = q_ref[0].astype(compute_dtype)    # [H, Tq, d_k]
    k = k_ref[0].astype(compute_dtype)    # [H, Lk, d_k]
    v = v_ref[0].astype(compute_dtype)    # [H, Lk, d_v]

    # scores = (Q @ K^T) / sqrt(d_k); contracting the last dims avoids building K^T.
    scores = jnp.einsum("hqd,hkd->hqk", q, k,
                        preferred_element_type=jnp.float32) * scale   # [H, Tq, Lk] f32

    # Numerically-stable softmax, entirely in f32.
    m = jnp.max(scores, axis=-1, keepdims=True)
    p = jnp.exp(scores - m)
    denom = jnp.sum(p, axis=-1, keepdims=True)
    inv = pl.reciprocal(denom, approx=True)        # EUP slot, ~free next to the VALU
    attn = p * inv                                 # broadcast multiply, no [Tq,Lk] divide

    ctx = jnp.einsum("hqk,hkd->hqd", attn.astype(compute_dtype), v,
                     preferred_element_type=jnp.float32)              # [H, Tq, d_v]

    ctx_ref[0] = ctx.astype(ctx_ref.dtype)
    attn_ref[0] = attn.astype(attn_ref.dtype)


def _pick_block_q(L, max_block=256):
    """Largest query tile (multiple of 8) that divides L, capped at max_block."""
    if L <= max_block:
        return L
    bq = (max_block // 8) * 8
    while bq >= 8:
        if L % bq == 0:
            return bq
        bq -= 8
    return L


def scaled_dot_product_attention(Q, K, V, *, block_q=None,
                                 compute_dtype=jnp.bfloat16):
    """Forward pass equivalent to ScaledDotProductAttention.forward (no mask)."""
    B, H, Lq, Dk = Q.shape
    _, _, Lk, Dv = V.shape
    assert K.shape == (B, H, Lk, Dk)

    if block_q is None:
        block_q = _pick_block_q(Lq)
    assert Lq % block_q == 0, "query length must be divisible by block_q"
    grid = (B, Lq // block_q)

    scale = 1.0 / math.sqrt(d_k)                  # module scales by sqrt(d_k)=sqrt(128)
    kernel = functools.partial(_sdpa_kernel, scale=scale,
                               compute_dtype=compute_dtype)

    out_dtype = Q.dtype
    flops = 2 * B * H * Lq * Lk * (Dk + Dv)       # QK^T + attn@V
    bytes_accessed = 4 * (Q.size + K.size + V.size
                          + B * H * Lq * Dv + B * H * Lq * Lk)

    return pl.pallas_call(
        kernel,
        out_shape=(
            jax.ShapeDtypeStruct((B, H, Lq, Dv), out_dtype),   # context
            jax.ShapeDtypeStruct((B, H, Lq, Lk), out_dtype),   # attn
        ),
        grid=grid,
        in_specs=[
            pl.BlockSpec((1, H, block_q, Dk), lambda b, qi: (b, 0, qi, 0)),  # Q tile
            pl.BlockSpec((1, H, Lk, Dk),      lambda b, qi: (b, 0, 0, 0)),   # K (full)
            pl.BlockSpec((1, H, Lk, Dv),      lambda b, qi: (b, 0, 0, 0)),   # V (full)
        ],
        out_specs=(
            pl.BlockSpec((1, H, block_q, Dv), lambda b, qi: (b, 0, qi, 0)),
            pl.BlockSpec((1, H, block_q, Lk), lambda b, qi: (b, 0, qi, 0)),
        ),
        compiler_params=pltpu.CompilerParams(
            dimension_semantics=("parallel", "parallel"),
            vmem_limit_bytes=64 * 1024 * 1024,
        ),
        cost_estimate=pl.CostEstimate(
            flops=flops,
            transcendentals=B * H * Lq * Lk,
            bytes_accessed=bytes_accessed,
        ),
    )(Q, K, V)


if __name__ == "__main__":
    key = jax.random.PRNGKey(0)
    kq, kk, kv = jax.random.split(key, 3)

    B, H, L = 2, 4, 8
    Q = jax.random.normal(kq, (B, H, L, d_k), jnp.float32)
    K = jax.random.normal(kk, (B, H, L, d_k), jnp.float32)
    V = jax.random.normal(kv, (B, H, L, d_v), jnp.float32)

    ctx, attn = scaled_dot_product_attention(Q, K, V)
    jax.block_until_ready((ctx, attn))

    assert ctx.shape == (B, H, L, d_v)
    assert attn.shape == (B, H, L, L)

    # Loose sanity check vs a pure-JAX reference (kernel matmuls run in bf16
    # with f32 accumulation + approx reciprocal, so tolerance is generous).
    ref_scores = jnp.einsum("bhqd,bhkd->bhqk", Q, K) / math.sqrt(d_k)
    ref_attn = jax.nn.softmax(ref_scores, axis=-1)
    ref_ctx = jnp.einsum("bhqk,bhkd->bhqd", ref_attn, V)
    err = max(float(jnp.max(jnp.abs(ctx - ref_ctx))),
              float(jnp.max(jnp.abs(attn - ref_attn))))
    assert err < 1e-1, f"numerical mismatch vs reference: {err}"

    print("KERNEL_OK")
</pallas_src>

<mosaic_0001>
module attributes {stable_mosaic.version = 11 : i64} {
  func.func @_sdpa_kernel(%arg0: i32, %arg1: i32, %arg2: memref<1x4x8x128xf32, #tpu.memory_space<vmem>>, %arg3: memref<1x4x8x128xf32, #tpu.memory_space<vmem>>, %arg4: memref<1x4x8x128xf32, #tpu.memory_space<vmem>>, %arg5: memref<1x4x8x128xf32, #tpu.memory_space<vmem>>, %arg6: memref<1x4x8x8xf32, #tpu.memory_space<vmem>>) attributes {dimension_semantics = [#tpu.dimension_semantics<parallel>, #tpu.dimension_semantics<parallel>], iteration_bounds = array<i64: 2, 1>, scalar_prefetch = 0 : i64, scratch_operands = 0 : i64, tpu.core_type = #tpu.core_type<tc>, window_params = [{transform_indices = @transform_0, window_bounds = array<i64: 1, 4, 8, 128>}, {transform_indices = @transform_1, window_bounds = array<i64: 1, 4, 8, 128>}, {transform_indices = @transform_2, window_bounds = array<i64: 1, 4, 8, 128>}, {transform_indices = @transform_3, window_bounds = array<i64: 1, 4, 8, 128>}, {transform_indices = @transform_4, window_bounds = array<i64: 1, 4, 8, 8>}]} {
    %c0 = arith.constant 0 : index
    %c0_0 = arith.constant 0 : index
    %c0_1 = arith.constant 0 : index
    %c0_2 = arith.constant 0 : index
    %0 = vector.load %arg2[%c0, %c0_0, %c0_1, %c0_2] : memref<1x4x8x128xf32, #tpu.memory_space<vmem>>, vector<1x4x8x128xf32>
    %1 = vector.shape_cast %0 : vector<1x4x8x128xf32> to vector<4x8x128xf32>
    %2 = arith.truncf %1 : vector<4x8x128xf32> to vector<4x8x128xbf16>
    %c0_3 = arith.constant 0 : index
    %c0_4 = arith.constant 0 : index
    %c0_5 = arith.constant 0 : index
    %c0_6 = arith.constant 0 : index
    %3 = vector.load %arg3[%c0_3, %c0_4, %c0_5, %c0_6] : memref<1x4x8x128xf32, #tpu.memory_space<vmem>>, vector<1x4x8x128xf32>
    %4 = vector.shape_cast %3 : vector<1x4x8x128xf32> to vector<4x8x128xf32>
    %5 = arith.truncf %4 : vector<4x8x128xf32> to vector<4x8x128xbf16>
    %c0_7 = arith.constant 0 : index
    %c0_8 = arith.constant 0 : index
    %c0_9 = arith.constant 0 : index
    %c0_10 = arith.constant 0 : index
    %6 = vector.load %arg4[%c0_7, %c0_8, %c0_9, %c0_10] : memref<1x4x8x128xf32, #tpu.memory_space<vmem>>, vector<1x4x8x128xf32>
    %7 = vector.shape_cast %6 : vector<1x4x8x128xf32> to vector<4x8x128xf32>
    %8 = arith.truncf %7 : vector<4x8x128xf32> to vector<4x8x128xbf16>
    "tpu.trace_start"() <{level = 10 : i32, message = "hqd,hkd->hqk"}> : () -> ()
    %cst = arith.constant dense<0.000000e+00> : vector<4x8x8xf32>
    %9 = tpu.matmul %2, %5, %cst {dimension_numbers = #tpu.dot_dimension_numbers<[2], [2], [1], [1], [0, 0, 0, 1, 1, 1], [0], [0]>} : vector<4x8x128xbf16>, vector<4x8x128xbf16>, vector<4x8x8xf32> -> vector<4x8x8xf32>
    "tpu.trace_stop"() : () -> ()
    %cst_11 = arith.constant 0.0883883461 : f32
    %10 = vector.broadcast %cst_11 : f32 to vector<4x8x8xf32>
    %11 = arith.mulf %9, %10 : vector<4x8x8xf32>
    %cst_12 = arith.constant dense<0xFF800000> : vector<4x8xf32>
    %12 = vector.multi_reduction <maximumf>, %11, %cst_12 [2] : vector<4x8x8xf32> to vector<4x8xf32>
    %13 = vector.shape_cast %12 : vector<4x8xf32> to vector<4x8x1xf32>
    %14 = vector.broadcast %13 : vector<4x8x1xf32> to vector<4x8x8xf32>
    %15 = arith.subf %11, %14 : vector<4x8x8xf32>
    %16 = math.exp %15 : vector<4x8x8xf32>
    %cst_13 = arith.constant dense<0.000000e+00> : vector<4x8xf32>
    %17 = vector.multi_reduction <add>, %16, %cst_13 [2] : vector<4x8x8xf32> to vector<4x8xf32>
    %18 = vector.shape_cast %17 : vector<4x8xf32> to vector<4x8x1xf32>
    %19 = tpu.reciprocal %18 {approx = true} : vector<4x8x1xf32> -> vector<4x8x1xf32>
    %20 = vector.broadcast %19 : vector<4x8x1xf32> to vector<4x8x8xf32>
    %21 = arith.mulf %16, %20 : vector<4x8x8xf32>
    %22 = arith.truncf %21 : vector<4x8x8xf32> to vector<4x8x8xbf16>
    "tpu.trace_start"() <{level = 10 : i32, message = "hqk,hkd->hqd"}> : () -> ()
    %cst_14 = arith.constant dense<0.000000e+00> : vector<4x8x128xf32>
    %23 = tpu.matmul %22, %8, %cst_14 {dimension_numbers = #tpu.dot_dimension_numbers<[2], [1], [1], [2], [0, 0, 0, 1, 1, 2], [0], [0]>} : vector<4x8x8xbf16>, vector<4x8x128xbf16>, vector<4x8x128xf32> -> vector<4x8x128xf32>
    "tpu.trace_stop"() : () -> ()
    %c0_15 = arith.constant 0 : index
    %c0_16 = arith.constant 0 : index
    %c0_17 = arith.constant 0 : index
    %c0_18 = arith.constant 0 : index
    %24 = vector.load %arg5[%c0_15, %c0_16, %c0_17, %c0_18] : memref<1x4x8x128xf32, #tpu.memory_space<vmem>>, vector<1x4x8x128xf32>
    %25 = vector.shape_cast %24 : vector<1x4x8x128xf32> to vector<4x8x128xf32>
    %26 = vector.shape_cast %23 : vector<4x8x128xf32> to vector<1x4x8x128xf32>
    tpu.vector_store %arg5[%c0_15, %c0_16, %c0_17, %c0_18], %26 {strides = array<i32>} : memref<1x4x8x128xf32, #tpu.memory_space<vmem>>, vector<1x4x8x128xf32>,
    %c0_19 = arith.constant 0 : index
    %c0_20 = arith.constant 0 : index
    %c0_21 = arith.constant 0 : index
    %c0_22 = arith.constant 0 : index
    %27 = vector.load %arg6[%c0_19, %c0_20, %c0_21, %c0_22] : memref<1x4x8x8xf32, #tpu.memory_space<vmem>>, vector<1x4x8x8xf32>
    %28 = vector.shape_cast %27 : vector<1x4x8x8xf32> to vector<4x8x8xf32>
    %29 = vector.shape_cast %21 : vector<4x8x8xf32> to vector<1x4x8x8xf32>
    tpu.vector_store %arg6[%c0_19, %c0_20, %c0_21, %c0_22], %29 {strides = array<i32>} : memref<1x4x8x8xf32, #tpu.memory_space<vmem>>, vector<1x4x8x8xf32>,
    return
  }
  func.func @transform_0(%arg0: i32, %arg1: i32) -> (i32, i32, i32, i32) {
    %c0_i32 = arith.constant 0 : i32
    %c0_i32_0 = arith.constant 0 : i32
    %c0_i32_1 = arith.constant 0 : i32
    return %arg0, %c0_i32, %arg1, %c0_i32_0 : i32, i32, i32, i32
  }
  func.func @transform_1(%arg0: i32, %arg1: i32) -> (i32, i32, i32, i32) {
    %c0_i32 = arith.constant 0 : i32
    %c0_i32_0 = arith.constant 0 : i32
    %c0_i32_1 = arith.constant 0 : i32
    %c0_i32_2 = arith.constant 0 : i32
    return %arg0, %c0_i32, %c0_i32_0, %c0_i32_1 : i32, i32, i32, i32
  }
  func.func @transform_2(%arg0: i32, %arg1: i32) -> (i32, i32, i32, i32) {
    %c0_i32 = arith.constant 0 : i32
    %c0_i32_0 = arith.constant 0 : i32
    %c0_i32_1 = arith.constant 0 : i32
    %c0_i32_2 = arith.constant 0 : i32
    return %arg0, %c0_i32, %c0_i32_0, %c0_i32_1 : i32, i32, i32, i32
  }
  func.func @transform_3(%arg0: i32, %arg1: i32) -> (i32, i32, i32, i32) {
    %c0_i32 = arith.constant 0 : i32
    %c0_i32_0 = arith.constant 0 : i32
    %c0_i32_1 = arith.constant 0 : i32
    return %arg0, %c0_i32, %arg1, %c0_i32_0 : i32, i32, i32, i32
  }
  func.func @transform_4(%arg0: i32, %arg1: i32) -> (i32, i32, i32, i32) {
    %c0_i32 = arith.constant 0 : i32
    %c0_i32_0 = arith.constant 0 : i32
    %c0_i32_1 = arith.constant 0 : i32
    return %arg0, %c0_i32, %arg1, %c0_i32_0 : i32, i32, i32, i32
  }
}

</mosaic_0001>

<llo_original>
// kernel: tpu_custom_call.1
$region0: #{tpu_custom_call.1}
  #allocation0 [shape = 'u32[]', space=smem, size = 0x4, offset = 0x4, fixed_abs, tag = 'smem constant byte address 0x4 - core index']
  #allocation1 [shape = 'u32[144,128]{1,0:T(1,128)}', space=vmem, size = 0x12000, scoped, tag = 'internal scratch']
  %s0 = inlined_call_operand.hbm [shape: f32[2,4,8,128], index: 0, kind: input, shape index: {}]
  %s1 = inlined_call_operand.hbm [shape: f32[2,4,8,128], index: 1, kind: input, shape index: {}]
  %s2 = inlined_call_operand.hbm [shape: f32[2,4,8,128], index: 2, kind: input, shape index: {}]
  %s3 = inlined_call_operand.hbm [shape: f32[2,4,8,128], index: 3, kind: output, shape index: {0}]
  %s4 = inlined_call_operand.hbm [shape: f32[2,4,8,8], index: 4, kind: output, shape index: {1}]
  %5 = xla_tuple %s3, %s4
  %s6 = sld [smem:[#allocation0]]
  $region65: #{tpu_custom_call.1} parent=0
    _
  %s8 = ssub.s32 1, %s6
  %s9 = scalar_select 0, %s8, %s6
  $region1: #{tpu_custom_call.1} parent=0
    #allocation2 [shape = 'u8[32768]{0}', space=vmem, size = 0x8000, scoped, tag = 'input window, operand 0']
    #allocation3 [shape = 's32[2]{0}', space=sflag, size = 0x8, scoped, tag = 'scoped memory for tpu_custom_call.1']
    #allocation4 [shape = 's32[2]{0}', space=sflag, size = 0x8, scoped, tag = 'scoped memory for tpu_custom_call.1']
    #allocation5 [shape = 'u8[32768]{0}', space=vmem, size = 0x8000, scoped, tag = 'input window, operand 1']
    #allocation6 [shape = 's32[2]{0}', space=sflag, size = 0x8, scoped, tag = 'scoped memory for tpu_custom_call.1']
    #allocation7 [shape = 'u8[32768]{0}', space=vmem, size = 0x8000, scoped, tag = 'input window, operand 2']
    #allocation8 [shape = 'u8[32768]{0}', space=vmem, size = 0x8000, scoped, tag = 'output window, operand 0']
    #allocation9 [shape = 'u8[32768]{0}', space=vmem, size = 0x8000, scoped, tag = 'output window, operand 1']
    #allocation10 [shape = 's32[2]{0}', space=sflag, size = 0x8, scoped, tag = 'scoped memory for tpu_custom_call.1']
    %10 = vsyncpa [#allocation3], 0
    %s11 = scalar_lea.sflag [#allocation3], 1
    %12 = vsyncpa %s11, 0
    %13 = vsyncpa [#allocation6], 0
    %s14 = scalar_lea.sflag [#allocation6], 1
    %15 = vsyncpa %s14, 0
    %16 = vsyncpa [#allocation4], 0
    %s17 = scalar_lea.sflag [#allocation4], 1
    %18 = vsyncpa %s17, 0
    %19 = vsyncpa [#allocation10], 0
    %s20 = scalar_lea.sflag [#allocation10], 1
    %21 = vsyncpa %s20, 0
    loop: start=0, step=1, limit=4
    $region2: #{tpu_custom_call.1} parent=1 // loop_pre_header
      _
    $region3: #{tpu_custom_call.1} parent=1 // loop_header
      %s23 = sphi 0, %s27
      %p24 = scmp.ge.s32.totalorder %s23, 4
      %s30 = sphi 0, %s42
      %s31 = sphi 0, %s38
      %s32 = sphi 0, %s30
      %s33 = sphi 0, %s31
      %s34 = sphi 0, %s32
      %s35 = sphi 0, %s33
      %s47 = sphi 0, %s49
      %s50 = sphi 0, %s47
      %s51 = sphi 0, %s50
      %s67 = sphi 0, %s51
      %s73 = sphi 0, %s75
      %s76 = sphi 0, %s73
      %s77 = sphi 0, %s76
      %s93 = sphi 0, %s77
      %s99 = sphi 0, %s101
      %s102 = sphi 0, %s99
      %s103 = sphi 0, %s102
      %s119 = sphi 0, %s103
      %s127 = sphi 0, %s129
      %s130 = sphi 0, %s127
      %s131 = sphi 0, %s130
      %s147 = sphi 0, %s131
      %s155 = sphi 0, %s157
      %s158 = sphi 0, %s155
      %s159 = sphi 0, %s158
      %s175 = sphi 0, %s159
    $region4: #{tpu_custom_call.1} parent=1 // loop_header_branch
      %26 = sbr.rel (%p24) target = $region8
    $region5: #{tpu_custom_call.1} parent=1 // loop_body
      %s28 = ssub.s32 %s23, 1
      %s29 = ssub.s32 %s23, 2
      %s36 = sadd.s32 1, %s31
      %p37 = scmp.ge.s32.totalorder %s36, 1
      %s38 = scalar_select %p37, 0, %s36
      %s39 = sadd.s32 1, %s30
      %s40 = scalar_select %p37, %s39, %s30
      %p41 = scmp.ge.s32.totalorder %s40, 2
      %s42 = scalar_select %p41, 0, %s40
      %s43 = ssub.s32 %s30, %s42
      %s44 = ssub.s32 %s31, %s38
      %s45 = sor.u32 %s43, %s44
      %p46 = scmp.eq.s32.totalorder %s45, 0
      %s48 = sadd.s32 %s47, 1
      %s49 = scalar_select %p46, %s47, %s48
      %p52 = pneg %p46
      %p53 = scmp.eq.s32.totalorder %s23, 1
      %p54 = por %p52, %p53
      %p55 = scmp.ne.s32.totalorder %s47, %s50
      %p56 = scmp.eq.s32.totalorder %s23, 0
      %p57 = por %p55, %p56
      %p58 = scmp.ne.s32.totalorder %s47, %s50
      %p59 = scmp.eq.s32.totalorder %s28, 1
      %p60 = por %p58, %p59
      %p61 = scmp.ne.s32.totalorder %s50, %s51
      %p62 = scmp.eq.s32.totalorder %s28, 0
      %p63 = por %p61, %p62
      %p64 = scmp.ne.s32.totalorder %s50, %s51
      %p65 = scmp.eq.s32.totalorder %s29, 1
      %p66 = por %p64, %p65
      %p68 = scmp.ne.s32.totalorder %s51, %s67
      %p69 = scmp.eq.s32.totalorder %s29, 0
      %p70 = por %p68, %p69
      %s71 = ssub.s32 %s30, %s42
      %p72 = scmp.eq.s32.totalorder %s71, 0
      %s74 = sadd.s32 %s73, 1
      %s75 = scalar_select %p72, %s73, %s74
      %p78 = pneg %p72
      %p79 = scmp.eq.s32.totalorder %s23, 1
      %p80 = por %p78, %p79
      %p81 = scmp.ne.s32.totalorder %s73, %s76
      %p82 = scmp.eq.s32.totalorder %s23, 0
      %p83 = por %p81, %p82
      %p84 = scmp.ne.s32.totalorder %s73, %s76
      %p85 = scmp.eq.s32.totalorder %s28, 1
      %p86 = por %p84, %p85
      %p87 = scmp.ne.s32.totalorder %s76, %s77
      %p88 = scmp.eq.s32.totalorder %s28, 0
      %p89 = por %p87, %p88
      %p90 = scmp.ne.s32.totalorder %s76, %s77
      %p91 = scmp.eq.s32.totalorder %s29, 1
      %p92 = por %p90, %p91
      %p94 = scmp.ne.s32.totalorder %s77, %s93
      %p95 = scmp.eq.s32.totalorder %s29, 0
      %p96 = por %p94, %p95
      %s97 = ssub.s32 %s30, %s42
      %p98 = scmp.eq.s32.totalorder %s97, 0
      %s100 = sadd.s32 %s99, 1
      %s101 = scalar_select %p98, %s99, %s100
      %p104 = pneg %p98
      %p105 = scmp.eq.s32.totalorder %s23, 1
      %p106 = por %p104, %p105
      %p107 = scmp.ne.s32.totalorder %s99, %s102
      %p108 = scmp.eq.s32.totalorder %s23, 0
      %p109 = por %p107, %p108
      %p110 = scmp.ne.s32.totalorder %s99, %s102
      %p111 = scmp.eq.s32.totalorder %s28, 1
      %p112 = por %p110, %p111
      %p113 = scmp.ne.s32.totalorder %s102, %s103
      %p114 = scmp.eq.s32.totalorder %s28, 0
      %p115 = por %p113, %p114
      %p116 = scmp.ne.s32.totalorder %s102, %s103
      %p117 = scmp.eq.s32.totalorder %s29, 1
      %p118 = por %p116, %p117
      %p120 = scmp.ne.s32.totalorder %s103, %s119
      %p121 = scmp.eq.s32.totalorder %s29, 0
      %p122 = por %p120, %p121
      %s123 = ssub.s32 %s30, %s42
      %s124 = ssub.s32 %s31, %s38
      %s125 = sor.u32 %s123, %s124
      %p126 = scmp.eq.s32.totalorder %s125, 0
      %s128 = sadd.s32 %s127, 1
      %s129 = scalar_select %p126, %s127, %s128
      %p132 = pneg %p126
      %p133 = scmp.eq.s32.totalorder %s23, 1
      %p134 = por %p132, %p133
      %p135 = scmp.ne.s32.totalorder %s127, %s130
      %p136 = scmp.eq.s32.totalorder %s23, 0
      %p137 = por %p135, %p136
      %p138 = scmp.ne.s32.totalorder %s127, %s130
      %p139 = scmp.eq.s32.totalorder %s28, 1
      %p140 = por %p138, %p139
      %p141 = scmp.ne.s32.totalorder %s130, %s131
      %p142 = scmp.eq.s32.totalorder %s28, 0
      %p143 = por %p141, %p142
      %p144 = scmp.ne.s32.totalorder %s130, %s131
      %p145 = scmp.eq.s32.totalorder %s29, 1
      %p146 = por %p144, %p145
      %p148 = scmp.ne.s32.totalorder %s131, %s147
      %p149 = scmp.eq.s32.totalorder %s29, 0
      %p150 = por %p148, %p149
      %s151 = ssub.s32 %s30, %s42
      %s152 = ssub.s32 %s31, %s38
      %s153 = sor.u32 %s151, %s152
      %p154 = scmp.eq.s32.totalorder %s153, 0
      %s156 = sadd.s32 %s155, 1
      %s157 = scalar_select %p154, %s155, %s156
      %p160 = pneg %p154
      %p161 = scmp.eq.s32.totalorder %s23, 1
      %p162 = por %p160, %p161
      %p163 = scmp.ne.s32.totalorder %s155, %s158
      %p164 = scmp.eq.s32.totalorder %s23, 0
      %p165 = por %p163, %p164
      %p166 = scmp.ne.s32.totalorder %s155, %s158
      %p167 = scmp.eq.s32.totalorder %s28, 1
      %p168 = por %p166, %p167
      %p169 = scmp.ne.s32.totalorder %s158, %s159
      %p170 = scmp.eq.s32.totalorder %s28, 0
      %p171 = por %p169, %p170
      %p172 = scmp.ne.s32.totalorder %s158, %s159
      %p173 = scmp.eq.s32.totalorder %s29, 1
      %p174 = por %p172, %p173
      %p176 = scmp.ne.s32.totalorder %s159, %s175
      %p177 = scmp.eq.s32.totalorder %s29, 0
      %p178 = por %p176, %p177
      %p179 = scmp.le.s32.totalorder 1, %s23
      %p180 = scmp.lt.s32.totalorder %s23, 3
      %p181 = pnand %p179, %p180
      %p182 = pneg %p181
      // Predicated region
      $region9: #{tpu_custom_call.1} parent=5 // pred_check
        _
      $region10: #{tpu_custom_call.1} parent=5 // pred_check_branch
        %184 = sbr.rel (%p181) target = $region12
      $region11: #{tpu_custom_call.1} parent=5 // pred_region
        %s185 = ssub.s32 %s23, 1
      $region12: #{tpu_custom_call.1} parent=5 // pred_fallthru
        _
      %p186 = scmp.lt.s32.totalorder %s23, 2
      // Predicated region
      $region13: #{tpu_custom_call.1} parent=5 // pred_check
        %p187 = pneg %p186
      $region14: #{tpu_custom_call.1} parent=5 // pred_check_branch
        %189 = sbr.rel (%p187) target = $region16
      $region15: #{tpu_custom_call.1} parent=5 // pred_region
        // Predicated region
        $region17: #{tpu_custom_call.1} parent=15 // pred_check
          %p190 = pneg %p57
        $region18: #{tpu_custom_call.1} parent=15 // pred_check_branch
          %192 = sbr.rel (%p190) target = $region20
        $region19: #{tpu_custom_call.1} parent=15 // pred_region
          %s193 = sand.u32 %s47, 1
          %s194 = scalar_lea.sflag [#allocation3], %s193
          %s195 = sand.u32 %s47, 1
          %s196 = smul.addr %s195, 32
          %s197 = scalar_lea.vmem [#allocation2], %s196
          %s199 = ssub.s32 512, 512
          %200 = vsyncadd %s194, %s199
          %s201 = smul.addr %s30, 4
          %s202 = sadd.s32 %s31, %s201
          %s203 = smul.addr %s202, 128
          %s204 = scalar_lea.hbm %s0, %s203
          %s205 = sshll.u32 %s197, 4
          %s206 = int_to_ptr.vmem [resolvable:$true] %s205
          %211 = dma.hbm_to_vmem [thread:$0]  %s204, 512, %s206, %s194, 128, 128, 8
        $region20: #{tpu_custom_call.1} parent=15 // pred_fallthru
          _
        // Predicated region
        $region21: #{tpu_custom_call.1} parent=15 // pred_check
          %p212 = pneg %p83
        $region22: #{tpu_custom_call.1} parent=15 // pred_check_branch
          %214 = sbr.rel (%p212) target = $region24
        $region23: #{tpu_custom_call.1} parent=15 // pred_region
          %s215 = sand.u32 %s23, 1
          %s216 = scalar_lea.sflag [#allocation6], %s215
          %s217 = sand.u32 %s73, 1
          %s218 = smul.addr %s217, 32
          %s219 = scalar_lea.vmem [#allocation5], %s218
          %s221 = ssub.s32 512, 512
          %222 = vsyncadd %s216, %s221
          %s223 = smul.addr %s30, 4
          %s224 = smul.addr %s223, 128
          %s225 = scalar_lea.hbm %s1, %s224
          %s226 = sshll.u32 %s219, 4
          %s227 = int_to_ptr.vmem [resolvable:$true] %s226
          %232 = dma.hbm_to_vmem [thread:$0]  %s225, 512, %s227, %s216, 128, 128, 8
        $region24: #{tpu_custom_call.1} parent=15 // pred_fallthru
          _
        // Predicated region
        $region25: #{tpu_custom_call.1} parent=15 // pred_check
          %p233 = pneg %p109
        $region26: #{tpu_custom_call.1} parent=15 // pred_check_branch
          %235 = sbr.rel (%p233) target = $region28
        $region27: #{tpu_custom_call.1} parent=15 // pred_region
          %s236 = sand.u32 %s23, 1
          %s237 = scalar_lea.sflag [#allocation6], %s236
          %s238 = sand.u32 %s99, 1
          %s239 = smul.addr %s238, 32
          %s240 = scalar_lea.vmem [#allocation7], %s239
          %s242 = ssub.s32 512, 512
          %243 = vsyncadd %s237, %s242
          %s244 = smul.addr %s30, 4
          %s245 = smul.addr %s244, 128
          %s246 = scalar_lea.hbm %s2, %s245
          %s247 = sshll.u32 %s240, 4
          %s248 = int_to_ptr.vmem [resolvable:$true] %s247
          %253 = dma.hbm_to_vmem [thread:$0]  %s246, 512, %s248, %s237, 128, 128, 8
        $region28: #{tpu_custom_call.1} parent=15 // pred_fallthru
          _
      $region16: #{tpu_custom_call.1} parent=5 // pred_fallthru
        _
      %p254 = scmp.le.s32.totalorder 1, %s23
      %p255 = scmp.lt.s32.totalorder %s23, 3
      %p256 = pnand %p254, %p255
      %p257 = pneg %p256
      // Predicated region
      $region29: #{tpu_custom_call.1} parent=5 // pred_check
        _
      $region30: #{tpu_custom_call.1} parent=5 // pred_check_branch
        %259 = sbr.rel (%p256) target = $region32
      $region31: #{tpu_custom_call.1} parent=5 // pred_region
        %s260 = ssub.s32 %s23, 1
        %s261 = sand.u32 %s50, 1
        %s262 = scalar_lea.sflag [#allocation3], %s261
        %s263 = sand.u32 %s50, 1
        %s264 = smul.addr %s263, 32
        %s265 = scalar_lea.vmem [#allocation2], %s264
        // Predicated region
        $region33: #{tpu_custom_call.1} parent=31 // pred_check
          %p266 = pneg %p63
        $region34: #{tpu_custom_call.1} parent=31 // pred_check_branch
          %268 = sbr.rel (%p266) target = $region36
        $region35: #{tpu_custom_call.1} parent=31 // pred_region
          %269 = dma.done %s262, 512
        $region36: #{tpu_custom_call.1} parent=31 // pred_fallthru
          _
        %s270 = sand.u32 %s28, 1
        %s271 = scalar_lea.sflag [#allocation6], %s270
        %s272 = sand.u32 %s76, 1
        %s273 = smul.addr %s272, 32
        %s274 = scalar_lea.vmem [#allocation5], %s273
        // Predicated region
        $region37: #{tpu_custom_call.1} parent=31 // pred_check
          %p275 = pneg %p89
        $region38: #{tpu_custom_call.1} parent=31 // pred_check_branch
          %277 = sbr.rel (%p275) target = $region40
        $region39: #{tpu_custom_call.1} parent=31 // pred_region
          %278 = dma.done %s271, 512
        $region40: #{tpu_custom_call.1} parent=31 // pred_fallthru
          _
        %s279 = sand.u32 %s28, 1
        %s280 = scalar_lea.sflag [#allocation6], %s279
        %s281 = sand.u32 %s102, 1
        %s282 = smul.addr %s281, 32
        %s283 = scalar_lea.vmem [#allocation7], %s282
        // Predicated region
        $region41: #{tpu_custom_call.1} parent=31 // pred_check
          %p284 = pneg %p115
        $region42: #{tpu_custom_call.1} parent=31 // pred_check_branch
          %286 = sbr.rel (%p284) target = $region44
        $region43: #{tpu_custom_call.1} parent=31 // pred_region
          %287 = dma.done %s280, 512
        $region44: #{tpu_custom_call.1} parent=31 // pred_fallthru
          _
        %s288 = sand.u32 %s50, 1
        %s289 = scalar_lea.sflag [#allocation3], %s288
        %s290 = sand.u32 %s50, 1
        %s291 = smul.addr %s290, 32
        %s292 = scalar_lea.vmem [#allocation2], %s291
        %p293 = pneg %p63
        %p294 = pneg %p60
        %s295 = sand.u32 %s28, 1
        %s296 = scalar_lea.sflag [#allocation6], %s295
        %s297 = sand.u32 %s76, 1
        %s298 = smul.addr %s297, 32
        %s299 = scalar_lea.vmem [#allocation5], %s298
        %p300 = pneg %p89
        %p301 = pneg %p86
        %s302 = sand.u32 %s28, 1
        %s303 = scalar_lea.sflag [#allocation6], %s302
        %s304 = sand.u32 %s102, 1
        %s305 = smul.addr %s304, 32
        %s306 = scalar_lea.vmem [#allocation7], %s305
        %p307 = pneg %p115
        %p308 = pneg %p112
        %p309 = pneg %p143
        %p310 = pneg %p140
        %s311 = sand.u32 %s130, 1
        %s312 = scalar_lea.sflag [#allocation4], %s311
        %s313 = sand.u32 %s130, 1
        %s314 = smul.addr %s313, 32
        %s315 = scalar_lea.vmem [#allocation8], %s314
        %p316 = pneg %p171
        %p317 = pneg %p168
        %s318 = sand.u32 %s158, 1
        %s319 = scalar_lea.sflag [#allocation10], %s318
        %s320 = sand.u32 %s158, 1
        %s321 = smul.addr %s320, 32
        %s322 = scalar_lea.vmem [#allocation9], %s321
        %v324 = vld [vmem:[%s265] sm:$0xff]
        %v325 = vld [vmem:[%s265 + $0x8] sm:$0xff]
        %v326 = vld [vmem:[%s265 + $0x10] sm:$0xff]
        %v327 = vld [vmem:[%s265 + $0x18] sm:$0xff]
        %v328 = vpack.c.bf16 %v324, %v324
        %v329 = vpack.c.bf16 %v325, %v325
        %v330 = vpack.c.bf16 %v326, %v326
        %v331 = vpack.c.bf16 %v327, %v327
        %v332 = vld [vmem:[%s274] sm:$0xff]
        %v333 = vld [vmem:[%s274 + $0x8] sm:$0xff]
        %v334 = vld [vmem:[%s274 + $0x10] sm:$0xff]
        %v335 = vld [vmem:[%s274 + $0x18] sm:$0xff]
        %v336 = vpack.c.bf16 %v332, %v332
        %v337 = vpack.c.bf16 %v333, %v333
        %v338 = vpack.c.bf16 %v334, %v334
        %v339 = vpack.c.bf16 %v335, %v335
        %v340 = vld [vmem:[%s283] sm:$0xff]
        %v341 = vld [vmem:[%s283 + $0x8] sm:$0xff]
        %v342 = vld [vmem:[%s283 + $0x10] sm:$0xff]
        %v343 = vld [vmem:[%s283 + $0x18] sm:$0xff]
        %v344 = vpack.c.bf16 %v340, %v340
        %v345 = vpack.c.bf16 %v341, %v341
        %v346 = vpack.c.bf16 %v342, %v342
        %v347 = vpack.c.bf16 %v343, %v343
        %348 = vmatprep.subr.bf16.mxu0 0
        %349 = vmatpush1.bf16.xpose.msra.mxu0 0
        %350 = vmatprep.subr.bf16.mxu0 0
        %351 = vmatpush1.bf16.xpose.msra.mxu0 0
        %352 = vmatprep.subr.bf16.mxu0 0
        %353 = vmatpush1.bf16.xpose.msra.mxu0 0
        %354 = vmatprep.subr.bf16.mxu0 0
        %355 = vmatpush1.bf16.xpose.msra.mxu0 0
        %356 = vmatprep.subr.bf16.mxu0 0
        %357 = vmatpush1.bf16.xpose.msra.mxu0 0
        %358 = vmatprep.subr.bf16.mxu0 0
        %359 = vmatpush1.bf16.xpose.msra.mxu0 0
        %360 = vmatprep.subr.bf16.mxu0 0
        %361 = vmatpush1.bf16.xpose.msra.mxu0 0
        %362 = vmatprep.subr.bf16.mxu0 0
        %363 = vmatpush1.bf16.xpose.msra.mxu0 %v336
        %364 = vmatprep.subr.bf16.mxu0 0
        %365 = vmatpush2.bf16.xpose.msra.mxu0 0
        %366 = vmatprep.subr.bf16.mxu0 0
        %367 = vmatpush2.bf16.xpose.msra.mxu0 0
        %368 = vmatprep.subr.bf16.mxu0 0
        %369 = vmatpush2.bf16.xpose.msra.mxu0 0
        %370 = vmatprep.subr.bf16.mxu0 0
        %371 = vmatpush2.bf16.xpose.msra.mxu0 0
        %372 = vmatprep.subr.bf16.mxu0 0
        %373 = vmatpush2.bf16.xpose.msra.mxu0 0
        %374 = vmatprep.subr.bf16.mxu0 0
        %375 = vmatpush2.bf16.xpose.msra.mxu0 0
        %376 = vmatprep.subr.bf16.mxu0 0
        %377 = vmatpush2.bf16.xpose.msra.mxu0 0
        %378 = vmatprep.subr.bf16.mxu0 0
        %379 = vmatpush2.bf16.xpose.msra.mxu0 0
        %380 = vmatprep.mubr.bf16.mxu0 0
        %381 = vmatmul.mubr.bf16.gmra.mxu0 %v328
        %v382 = vpop.f32.mrf.mxu0
        %v383 = vadd.f32 0.0, %v382
        %v384 = vpop.f32.mrf.mxu0
        %v385 = vpop.f32.mrf.mxu0
        %v386 = vpop.f32.mrf.mxu0
        %387 = vdwg.mxu0
        %388 = vmatprep.subr.bf16.mxu0 0
        %389 = vmatpush1.bf16.xpose.msra.mxu0 0
        %390 = vmatprep.subr.bf16.mxu0 0
        %391 = vmatpush1.bf16.xpose.msra.mxu0 0
        %392 = vmatprep.subr.bf16.mxu0 0
        %393 = vmatpush1.bf16.xpose.msra.mxu0 0
        %394 = vmatprep.subr.bf16.mxu0 0
        %395 = vmatpush1.bf16.xpose.msra.mxu0 0
        %396 = vmatprep.subr.bf16.mxu0 0
        %397 = vmatpush1.bf16.xpose.msra.mxu0 0
        %398 = vmatprep.subr.bf16.mxu0 0
        %399 = vmatpush1.bf16.xpose.msra.mxu0 0
        %400 = vmatprep.subr.bf16.mxu0 0
        %401 = vmatpush1.bf16.xpose.msra.mxu0 0
        %402 = vmatprep.subr.bf16.mxu0 0
        %403 = vmatpush1.bf16.xpose.msra.mxu0 %v337
        %404 = vmatprep.subr.bf16.mxu0 0
        %405 = vmatpush2.bf16.xpose.msra.mxu0 0
        %406 = vmatprep.subr.bf16.mxu0 0
        %407 = vmatpush2.bf16.xpose.msra.mxu0 0
        %408 = vmatprep.subr.bf16.mxu0 0
        %409 = vmatpush2.bf16.xpose.msra.mxu0 0
        %410 = vmatprep.subr.bf16.mxu0 0
        %411 = vmatpush2.bf16.xpose.msra.mxu0 0
        %412 = vmatprep.subr.bf16.mxu0 0
        %413 = vmatpush2.bf16.xpose.msra.mxu0 0
        %414 = vmatprep.subr.bf16.mxu0 0
        %415 = vmatpush2.bf16.xpose.msra.mxu0 0
        %416 = vmatprep.subr.bf16.mxu0 0
        %417 = vmatpush2.bf16.xpose.msra.mxu0 0
        %418 = vmatprep.subr.bf16.mxu0 0
        %419 = vmatpush2.bf16.xpose.msra.mxu0 0
        %420 = vmatprep.mubr.bf16.mxu0 0
        %421 = vmatmul.mubr.bf16.gmra.mxu0 %v329
        %v422 = vpop.f32.mrf.mxu0
        %v423 = vadd.f32 0.0, %v422
        %v424 = vpop.f32.mrf.mxu0
        %v425 = vpop.f32.mrf.mxu0
        %v426 = vpop.f32.mrf.mxu0
        %427 = vdwg.mxu0
        %428 = vmatprep.subr.bf16.mxu0 0
        %429 = vmatpush1.bf16.xpose.msra.mxu0 0
        %430 = vmatprep.subr.bf16.mxu0 0
        %431 = vmatpush1.bf16.xpose.msra.mxu0 0
        %432 = vmatprep.subr.bf16.mxu0 0
        %433 = vmatpush1.bf16.xpose.msra.mxu0 0
        %434 = vmatprep.subr.bf16.mxu0 0
        %435 = vmatpush1.bf16.xpose.msra.mxu0 0
        %436 = vmatprep.subr.bf16.mxu0 0
        %437 = vmatpush1.bf16.xpose.msra.mxu0 0
        %438 = vmatprep.subr.bf16.mxu0 0
        %439 = vmatpush1.bf16.xpose.msra.mxu0 0
        %440 = vmatprep.subr.bf16.mxu0 0
        %441 = vmatpush1.bf16.xpose.msra.mxu0 0
        %442 = vmatprep.subr.bf16.mxu0 0
        %443 = vmatpush1.bf16.xpose.msra.mxu0 %v338
        %444 = vmatprep.subr.bf16.mxu0 0
        %445 = vmatpush2.bf16.xpose.msra.mxu0 0
        %446 = vmatprep.subr.bf16.mxu0 0
        %447 = vmatpush2.bf16.xpose.msra.mxu0 0
        %448 = vmatprep.subr.bf16.mxu0 0
        %449 = vmatpush2.bf16.xpose.msra.mxu0 0
        %450 = vmatprep.subr.bf16.mxu0 0
        %451 = vmatpush2.bf16.xpose.msra.mxu0 0
        %452 = vmatprep.subr.bf16.mxu0 0
        %453 = vmatpush2.bf16.xpose.msra.mxu0 0
        %454 = vmatprep.subr.bf16.mxu0 0
        %455 = vmatpush2.bf16.xpose.msra.mxu0 0
        %456 = vmatprep.subr.bf16.mxu0 0
        %457 = vmatpush2.bf16.xpose.msra.mxu0 0
        %458 = vmatprep.subr.bf16.mxu0 0
        %459 = vmatpush2.bf16.xpose.msra.mxu0 0
        %460 = vmatprep.mubr.bf16.mxu0 0
        %461 = vmatmul.mubr.bf16.gmra.mxu0 %v330
        %v462 = vpop.f32.mrf.mxu0
        %v463 = vadd.f32 0.0, %v462
        %v464 = vpop.f32.mrf.mxu0
        %v465 = vpop.f32.mrf.mxu0
        %v466 = vpop.f32.mrf.mxu0
        %467 = vdwg.mxu0
        %468 = vmatprep.subr.bf16.mxu0 0
        %469 = vmatpush1.bf16.xpose.msra.mxu0 0
        %470 = vmatprep.subr.bf16.mxu0 0
        %471 = vmatpush1.bf16.xpose.msra.mxu0 0
        %472 = vmatprep.subr.bf16.mxu0 0
        %473 = vmatpush1.bf16.xpose.msra.mxu0 0
        %474 = vmatprep.subr.bf16.mxu0 0
        %475 = vmatpush1.bf16.xpose.msra.mxu0 0
        %476 = vmatprep.subr.bf16.mxu0 0
        %477 = vmatpush1.bf16.xpose.msra.mxu0 0
        %478 = vmatprep.subr.bf16.mxu0 0
        %479 = vmatpush1.bf16.xpose.msra.mxu0 0
        %480 = vmatprep.subr.bf16.mxu0 0
        %481 = vmatpush1.bf16.xpose.msra.mxu0 0
        %482 = vmatprep.subr.bf16.mxu0 0
        %483 = vmatpush1.bf16.xpose.msra.mxu0 %v339
        %484 = vmatprep.subr.bf16.mxu0 0
        %485 = vmatpush2.bf16.xpose.msra.mxu0 0
        %486 = vmatprep.subr.bf16.mxu0 0
        %487 = vmatpush2.bf16.xpose.msra.mxu0 0
        %488 = vmatprep.subr.bf16.mxu0 0
        %489 = vmatpush2.bf16.xpose.msra.mxu0 0
        %490 = vmatprep.subr.bf16.mxu0 0
        %491 = vmatpush2.bf16.xpose.msra.mxu0 0
        %492 = vmatprep.subr.bf16.mxu0 0
        %493 = vmatpush2.bf16.xpose.msra.mxu0 0
        %494 = vmatprep.subr.bf16.mxu0 0
        %495 = vmatpush2.bf16.xpose.msra.mxu0 0
        %496 = vmatprep.subr.bf16.mxu0 0
        %497 = vmatpush2.bf16.xpose.msra.mxu0 0
        %498 = vmatprep.subr.bf16.mxu0 0
        %499 = vmatpush2.bf16.xpose.msra.mxu0 0
        %500 = vmatprep.mubr.bf16.mxu0 0
        %501 = vmatmul.mubr.bf16.gmra.mxu0 %v331
        %v502 = vpop.f32.mrf.mxu0
        %v503 = vadd.f32 0.0, %v502
        %v504 = vpop.f32.mrf.mxu0
        %v505 = vpop.f32.mrf.mxu0
        %v506 = vpop.f32.mrf.mxu0
        %507 = vdwg.mxu0
        %v508 = vmul.f32 %v383, 0.088388346
        %v509 = vmul.f32 %v423, 0.088388346
        %v510 = vmul.f32 %v463, 0.088388346
        %v511 = vmul.f32 %v503, 0.088388346
        %vm512 = vcmask 64512
        %v513 = vsel %vm512, %v508, -inf
        %514 = vmax.xlane.f32.xlu0 %v513
        %v515 = vpop.xlane.xlu0 %514
        %v516 = vsel %vm512, %v509, -inf
        %517 = vmax.xlane.f32.xlu0 %v516
        %v518 = vpop.xlane.xlu0 %517
        %v519 = vsel %vm512, %v510, -inf
        %520 = vmax.xlane.f32.xlu0 %v519
        %v521 = vpop.xlane.xlu0 %520
        %v522 = vsel %vm512, %v511, -inf
        %523 = vmax.xlane.f32.xlu0 %v522
        %v524 = vpop.xlane.xlu0 %523
        %v525 = vsub.f32 %v508, %v515
        %v526 = vsub.f32 %v509, %v518
        %v527 = vsub.f32 %v510, %v521
        %v528 = vsub.f32 %v511, %v524
        %v529 = vmul.f32 %v525, 1.442695
        %v530 = vpow.pop %v529
        %v531 = vmul.f32 %v526, 1.442695
        %v532 = vpow.pop %v531
        %v533 = vmul.f32 %v527, 1.442695
        %v534 = vpow.pop %v533
        %v535 = vmul.f32 %v528, 1.442695
        %v536 = vpow.pop %v535
        %v537 = vsel %vm512, %v530, 0.0
        %538 = vadd.xlane.f32.xlu0 %v537
        %v539 = vpop.xlane.xlu0 %538
        %v540 = vsel %vm512, %v532, 0.0
        %541 = vadd.xlane.f32.xlu0 %v540
        %v542 = vpop.xlane.xlu0 %541
        %v543 = vsel %vm512, %v534, 0.0
        %544 = vadd.xlane.f32.xlu0 %v543
        %v545 = vpop.xlane.xlu0 %544
        %v546 = vsel %vm512, %v536, 0.0
        %547 = vadd.xlane.f32.xlu0 %v546
        %v548 = vpop.xlane.xlu0 %547
        %v549 = vrcp.pop %v539
        %v550 = vrcp.pop %v542
        %v551 = vrcp.pop %v545
        %v552 = vrcp.pop %v548
        %v553 = vmul.f32 %v530, %v549
        %v554 = vmul.f32 %v532, %v550
        %v555 = vmul.f32 %v534, %v551
        %v556 = vmul.f32 %v536, %v552
        %v557 = vpack.c.bf16 %v553, %v553
        %v558 = vpack.c.bf16 %v554, %v554
        %v559 = vpack.c.bf16 %v555, %v555
        %v560 = vpack.c.bf16 %v556, %v556
        %v562 = vsel %vm512, %v557, 0
        %vm564 = vcmask 1043456
        %v566 = vsel %vm564, %v344, 0
        %568 = vmatprep.subr.bf16.mxu0 0
        %569 = vmatpush1.bf16.msra.mxu0 0
        %570 = vmatprep.subr.bf16.mxu0 0
        %571 = vmatpush1.bf16.msra.mxu0 0
        %572 = vmatprep.subr.bf16.mxu0 0
        %573 = vmatpush1.bf16.msra.mxu0 0
        %574 = vmatprep.subr.bf16.mxu0 0
        %575 = vmatpush1.bf16.msra.mxu0 0
        %576 = vmatprep.subr.bf16.mxu0 0
        %577 = vmatpush1.bf16.msra.mxu0 0
        %578 = vmatprep.subr.bf16.mxu0 0
        %579 = vmatpush1.bf16.msra.mxu0 0
        %580 = vmatprep.subr.bf16.mxu0 0
        %581 = vmatpush1.bf16.msra.mxu0 0
        %582 = vmatprep.subr.bf16.mxu0 0
        %583 = vmatpush1.bf16.msra.mxu0 %v566
        %584 = vmatprep.subr.bf16.mxu0 0
        %585 = vmatpush2.bf16.msra.mxu0 0
        %586 = vmatprep.subr.bf16.mxu0 0
        %587 = vmatpush2.bf16.msra.mxu0 0
        %588 = vmatprep.subr.bf16.mxu0 0
        %589 = vmatpush2.bf16.msra.mxu0 0
        %590 = vmatprep.subr.bf16.mxu0 0
        %591 = vmatpush2.bf16.msra.mxu0 0
        %592 = vmatprep.subr.bf16.mxu0 0
        %593 = vmatpush2.bf16.msra.mxu0 0
        %594 = vmatprep.subr.bf16.mxu0 0
        %595 = vmatpush2.bf16.msra.mxu0 0
        %596 = vmatprep.subr.bf16.mxu0 0
        %597 = vmatpush2.bf16.msra.mxu0 0
        %598 = vmatprep.subr.bf16.mxu0 0
        %599 = vmatpush2.bf16.msra.mxu0 0
        %600 = vmatprep.mubr.bf16.mxu0 0
        %601 = vmatmul.mubr.bf16.gmra.mxu0 %v562
        %v602 = vpop.f32.mrf.mxu0
        %v603 = vadd.f32 0.0, %v602
        %v604 = vpop.f32.mrf.mxu0
        %v605 = vpop.f32.mrf.mxu0
        %v606 = vpop.f32.mrf.mxu0
        %607 = vdwg.mxu0
        %v609 = vsel %vm512, %v558, 0
        %v612 = vsel %vm564, %v345, 0
        %614 = vmatprep.subr.bf16.mxu0 0
        %615 = vmatpush1.bf16.msra.mxu0 0
        %616 = vmatprep.subr.bf16.mxu0 0
        %617 = vmatpush1.bf16.msra.mxu0 0
        %618 = vmatprep.subr.bf16.mxu0 0
        %619 = vmatpush1.bf16.msra.mxu0 0
        %620 = vmatprep.subr.bf16.mxu0 0
        %621 = vmatpush1.bf16.msra.mxu0 0
        %622 = vmatprep.subr.bf16.mxu0 0
        %623 = vmatpush1.bf16.msra.mxu0 0
        %624 = vmatprep.subr.bf16.mxu0 0
        %625 = vmatpush1.bf16.msra.mxu0 0
        %626 = vmatprep.subr.bf16.mxu0 0
        %627 = vmatpush1.bf16.msra.mxu0 0
        %628 = vmatprep.subr.bf16.mxu0 0
        %629 = vmatpush1.bf16.msra.mxu0 %v612
        %630 = vmatprep.subr.bf16.mxu0 0
        %631 = vmatpush2.bf16.msra.mxu0 0
        %632 = vmatprep.subr.bf16.mxu0 0
        %633 = vmatpush2.bf16.msra.mxu0 0
        %634 = vmatprep.subr.bf16.mxu0 0
        %635 = vmatpush2.bf16.msra.mxu0 0
        %636 = vmatprep.subr.bf16.mxu0 0
        %637 = vmatpush2.bf16.msra.mxu0 0
        %638 = vmatprep.subr.bf16.mxu0 0
        %639 = vmatpush2.bf16.msra.mxu0 0
        %640 = vmatprep.subr.bf16.mxu0 0
        %641 = vmatpush2.bf16.msra.mxu0 0
        %642 = vmatprep.subr.bf16.mxu0 0
        %643 = vmatpush2.bf16.msra.mxu0 0
        %644 = vmatprep.subr.bf16.mxu0 0
        %645 = vmatpush2.bf16.msra.mxu0 0
        %646 = vmatprep.mubr.bf16.mxu0 0
        %647 = vmatmul.mubr.bf16.gmra.mxu0 %v609
        %v648 = vpop.f32.mrf.mxu0
        %v649 = vadd.f32 0.0, %v648
        %v650 = vpop.f32.mrf.mxu0
        %v651 = vpop.f32.mrf.mxu0
        %v652 = vpop.f32.mrf.mxu0
        %653 = vdwg.mxu0
        %v655 = vsel %vm512, %v559, 0
        %v658 = vsel %vm564, %v346, 0
        %660 = vmatprep.subr.bf16.mxu0 0
        %661 = vmatpush1.bf16.msra.mxu0 0
        %662 = vmatprep.subr.bf16.mxu0 0
        %663 = vmatpush1.bf16.msra.mxu0 0
        %664 = vmatprep.subr.bf16.mxu0 0
        %665 = vmatpush1.bf16.msra.mxu0 0
        %666 = vmatprep.subr.bf16.mxu0 0
        %667 = vmatpush1.bf16.msra.mxu0 0
        %668 = vmatprep.subr.bf16.mxu0 0
        %669 = vmatpush1.bf16.msra.mxu0 0
        %670 = vmatprep.subr.bf16.mxu0 0
        %671 = vmatpush1.bf16.msra.mxu0 0
        %672 = vmatprep.subr.bf16.mxu0 0
        %673 = vmatpush1.bf16.msra.mxu0 0
        %674 = vmatprep.subr.bf16.mxu0 0
        %675 = vmatpush1.bf16.msra.mxu0 %v658
        %676 = vmatprep.subr.bf16.mxu0 0
        %677 = vmatpush2.bf16.msra.mxu0 0
        %678 = vmatprep.subr.bf16.mxu0 0
        %679 = vmatpush2.bf16.msra.mxu0 0
        %680 = vmatprep.subr.bf16.mxu0 0
        %681 = vmatpush2.bf16.msra.mxu0 0
        %682 = vmatprep.subr.bf16.mxu0 0
        %683 = vmatpush2.bf16.msra.mxu0 0
        %684 = vmatprep.subr.bf16.mxu0 0
        %685 = vmatpush2.bf16.msra.mxu0 0
        %686 = vmatprep.subr.bf16.mxu0 0
        %687 = vmatpush2.bf16.msra.mxu0 0
        %688 = vmatprep.subr.bf16.mxu0 0
        %689 = vmatpush2.bf16.msra.mxu0 0
        %690 = vmatprep.subr.bf16.mxu0 0
        %691 = vmatpush2.bf16.msra.mxu0 0
        %692 = vmatprep.mubr.bf16.mxu0 0
        %693 = vmatmul.mubr.bf16.gmra.mxu0 %v655
        %v694 = vpop.f32.mrf.mxu0
        %v695 = vadd.f32 0.0, %v694
        %v696 = vpop.f32.mrf.mxu0
        %v697 = vpop.f32.mrf.mxu0
        %v698 = vpop.f32.mrf.mxu0
        %699 = vdwg.mxu0
        %v701 = vsel %vm512, %v560, 0
        %v704 = vsel %vm564, %v347, 0
        %706 = vmatprep.subr.bf16.mxu0 0
        %707 = vmatpush1.bf16.msra.mxu0 0
        %708 = vmatprep.subr.bf16.mxu0 0
        %709 = vmatpush1.bf16.msra.mxu0 0
        %710 = vmatprep.subr.bf16.mxu0 0
        %711 = vmatpush1.bf16.msra.mxu0 0
        %712 = vmatprep.subr.bf16.mxu0 0
        %713 = vmatpush1.bf16.msra.mxu0 0
        %714 = vmatprep.subr.bf16.mxu0 0
        %715 = vmatpush1.bf16.msra.mxu0 0
        %716 = vmatprep.subr.bf16.mxu0 0
        %717 = vmatpush1.bf16.msra.mxu0 0
        %718 = vmatprep.subr.bf16.mxu0 0
        %719 = vmatpush1.bf16.msra.mxu0 0
        %720 = vmatprep.subr.bf16.mxu0 0
        %721 = vmatpush1.bf16.msra.mxu0 %v704
        %722 = vmatprep.subr.bf16.mxu0 0
        %723 = vmatpush2.bf16.msra.mxu0 0
        %724 = vmatprep.subr.bf16.mxu0 0
        %725 = vmatpush2.bf16.msra.mxu0 0
        %726 = vmatprep.subr.bf16.mxu0 0
        %727 = vmatpush2.bf16.msra.mxu0 0
        %728 = vmatprep.subr.bf16.mxu0 0
        %729 = vmatpush2.bf16.msra.mxu0 0
        %730 = vmatprep.subr.bf16.mxu0 0
        %731 = vmatpush2.bf16.msra.mxu0 0
        %732 = vmatprep.subr.bf16.mxu0 0
        %733 = vmatpush2.bf16.msra.mxu0 0
        %734 = vmatprep.subr.bf16.mxu0 0
        %735 = vmatpush2.bf16.msra.mxu0 0
        %736 = vmatprep.subr.bf16.mxu0 0
        %737 = vmatpush2.bf16.msra.mxu0 0
        %738 = vmatprep.mubr.bf16.mxu0 0
        %739 = vmatmul.mubr.bf16.gmra.mxu0 %v701
        %v740 = vpop.f32.mrf.mxu0
        %v741 = vadd.f32 0.0, %v740
        %v742 = vpop.f32.mrf.mxu0
        %v743 = vpop.f32.mrf.mxu0
        %v744 = vpop.f32.mrf.mxu0
        %745 = vdwg.mxu0
        %746 = vst [vmem:[%s315] sm:$0xff] %v603
        %747 = vst [vmem:[%s315 + $0x8] sm:$0xff] %v649
        %748 = vst [vmem:[%s315 + $0x10] sm:$0xff] %v695
        %749 = vst [vmem:[%s315 + $0x18] sm:$0xff] %v741
        %750 = vst.msk [vmem:[%s322] sm:$0xff] %vm512, %v553
        %751 = vst.msk [vmem:[%s322 + $0x8] sm:$0xff] %vm512, %v554
        %752 = vst.msk [vmem:[%s322 + $0x10] sm:$0xff] %vm512, %v555
        %753 = vst.msk [vmem:[%s322 + $0x18] sm:$0xff] %vm512, %v556
        %s754 = sand.u32 %s130, 1
        %s755 = scalar_lea.sflag [#allocation4], %s754
        %s756 = sand.u32 %s130, 1
        %s757 = smul.addr %s756, 32
        %s758 = scalar_lea.vmem [#allocation8], %s757
        %s759 = sand.u32 %s158, 1
        %s760 = scalar_lea.sflag [#allocation10], %s759
        %s761 = sand.u32 %s158, 1
        %s762 = smul.addr %s761, 32
        %s763 = scalar_lea.vmem [#allocation9], %s762
        // Predicated region
        $region45: #{tpu_custom_call.1} parent=31 // pred_check
          %p764 = pneg %p140
        $region46: #{tpu_custom_call.1} parent=31 // pred_check_branch
          %766 = sbr.rel (%p764) target = $region48
        $region47: #{tpu_custom_call.1} parent=31 // pred_region
          %s768 = ssub.s32 512, 512
          %769 = vsyncadd %s755, %s768
          %s770 = smul.addr %s32, 4
          %s771 = sadd.s32 %s33, %s770
          %s772 = smul.addr %s771, 128
          %s773 = scalar_lea.hbm %s3, %s772
          %s774 = sshll.u32 %s758, 4
          %s775 = int_to_ptr.vmem [resolvable:$true] %s774
          %780 = dma.vmem_to_hbm [thread:$0]  %s775, 512, %s773, %s755, 128, 128, 8
        $region48: #{tpu_custom_call.1} parent=31 // pred_fallthru
          _
        // Predicated region
        $region49: #{tpu_custom_call.1} parent=31 // pred_check
          %p781 = pneg %p168
        $region50: #{tpu_custom_call.1} parent=31 // pred_check_branch
          %783 = sbr.rel (%p781) target = $region52
        $region51: #{tpu_custom_call.1} parent=31 // pred_region
          %s785 = ssub.s32 512, 512
          %786 = vsyncadd %s760, %s785
          %s787 = smul.addr %s32, 4
          %s788 = sadd.s32 %s33, %s787
          %s789 = smul.addr %s788, 128
          %s790 = scalar_lea.hbm %s4, %s789
          %s791 = sshll.u32 %s763, 4
          %s792 = int_to_ptr.vmem [resolvable:$true] %s791
          %797 = dma.vmem_to_hbm [thread:$0]  %s792, 512, %s790, %s760, 128, 128, 8
        $region52: #{tpu_custom_call.1} parent=31 // pred_fallthru
          _
      $region32: #{tpu_custom_call.1} parent=5 // pred_fallthru
        _
      %p798 = scmp.le.s32.totalorder 2, %s23
      // Predicated region
      $region53: #{tpu_custom_call.1} parent=5 // pred_check
        %p799 = pneg %p798
      $region54: #{tpu_custom_call.1} parent=5 // pred_check_branch
        %801 = sbr.rel (%p799) target = $region56
      $region55: #{tpu_custom_call.1} parent=5 // pred_region
        %s802 = ssub.s32 %s23, 2
        // Predicated region
        $region57: #{tpu_custom_call.1} parent=55 // pred_check
          %p803 = pneg %p146
        $region58: #{tpu_custom_call.1} parent=55 // pred_check_branch
          %805 = sbr.rel (%p803) target = $region60
        $region59: #{tpu_custom_call.1} parent=55 // pred_region
          %s806 = sand.u32 %s131, 1
          %s807 = scalar_lea.sflag [#allocation4], %s806
          %s808 = sand.u32 %s131, 1
          %s809 = smul.addr %s808, 32
          %s810 = scalar_lea.vmem [#allocation8], %s809
          %811 = dma.done %s807, 512
        $region60: #{tpu_custom_call.1} parent=55 // pred_fallthru
          _
        // Predicated region
        $region61: #{tpu_custom_call.1} parent=55 // pred_check
          %p812 = pneg %p174
        $region62: #{tpu_custom_call.1} parent=55 // pred_check_branch
          %814 = sbr.rel (%p812) target = $region64
        $region63: #{tpu_custom_call.1} parent=55 // pred_region
          %s815 = sand.u32 %s159, 1
          %s816 = scalar_lea.sflag [#allocation10], %s815
          %s817 = sand.u32 %s159, 1
          %s818 = smul.addr %s817, 32
          %s819 = scalar_lea.vmem [#allocation9], %s818
          %820 = dma.done %s816, 512
        $region64: #{tpu_custom_call.1} parent=55 // pred_fallthru
          _
      $region56: #{tpu_custom_call.1} parent=5 // pred_fallthru
        _
    $region6: #{tpu_custom_call.1} parent=1 // loop_footer
      %s27 = sadd.s32 1, %s23
    $region7: #{tpu_custom_call.1} parent=1 // loop_footer_branch
      %22 = sbr.rel target = $region3
    $region8: #{tpu_custom_call.1} parent=1 // loop_exit
      _
    %821 = vsyncpa [#allocation3], 1
    %s822 = scalar_lea.sflag [#allocation3], 1
    %823 = vsyncpa %s822, 1
    %824 = vsyncpa [#allocation6], 1
    %s825 = scalar_lea.sflag [#allocation6], 1
    %826 = vsyncpa %s825, 1
    %827 = vsyncpa [#allocation4], 1
    %s828 = scalar_lea.sflag [#allocation4], 1
    %829 = vsyncpa %s828, 1
    %830 = vsyncpa [#allocation10], 1
    %s831 = scalar_lea.sflag [#allocation10], 1
    %832 = vsyncpa %s831, 1

</llo_original>
